<compile_context>
chip_gen: v5e
topology: v5e:2x2
jax: 0.10.0
libtpu: 0.0.40
codegen_flags: <defaults>
</compile_context>

<pallas_src>
import functools
import math

import jax
import jax.numpy as jnp
from jax.experimental import pallas as pl
from jax.experimental.pallas import tpu as pltpu

ROW_TILE = 8192            # rows per grid step (tm*128 lanes*4B*2 bufs ~= 8 MiB logits)
CLAMP_MIN = 1e-7
RCE_MAX = -math.log(CLAMP_MIN)   # -log(1e-7) ~= 16.1181


def _round_up(x, m):
    return (x + m - 1) // m * m


def _per_row_loss(x, t, *, num_classes, alpha, beta):
    """alpha*CE + beta*RCE for each row of an f32 (TM, C) tile -> (TM, 1)."""
    c = x.shape[-1]
    class_ids = jax.lax.broadcasted_iota(jnp.int32, x.shape, 1)
    if num_classes < c:                         # only mask if extra class lanes exist
        x = jnp.where(class_ids < num_classes, x, jnp.float32(-1e30))
    m = jnp.max(x, axis=-1, keepdims=True)
    lse = m + jnp.log(jnp.sum(jnp.exp(x - m), axis=-1, keepdims=True))   # (TM, 1)
    logit_t = jnp.sum(jnp.where(class_ids == t, x, 0.0), axis=-1, keepdims=True)
    ce = lse - logit_t                           # -log_softmax[target]
    # Closed form of -log(clip(softmax[target], 1e-7, 1)):
    # softmax <= 1 so the upper clip is a no-op; the lower clip caps the loss.
    rce = jnp.minimum(ce, jnp.float32(RCE_MAX))
    return alpha * ce + beta * rce               # (TM, 1)


def _sym_ce_partial_kernel(logits_ref, tgt_ref, out_ref, *,
                           num_classes, alpha, beta, n_valid):
    """Per-block partial sum, written replicated into a (1, 8, 128) output tile."""
    i = pl.program_id(0)
    x = logits_ref[...].astype(jnp.float32)
    t = tgt_ref[...]
    loss = _per_row_loss(x, t, num_classes=num_classes, alpha=alpha, beta=beta)

    tm = x.shape[0]
    row_ids = i * tm + jax.lax.broadcasted_iota(jnp.int32, (tm, 1), 0)
    loss = jnp.where(row_ids < n_valid, loss, 0.0)      # mask rows of partial block
    out_ref[...] = jnp.full(out_ref.shape, jnp.sum(loss), jnp.float32)


def _sym_ce_rowwise_kernel(logits_ref, tgt_ref, out_ref, *, num_classes, alpha, beta):
    x = logits_ref[...].astype(jnp.float32)
    t = tgt_ref[...]
    out_ref[...] = _per_row_loss(x, t, num_classes=num_classes,
                                 alpha=alpha, beta=beta)


def symmetric_cross_entropy(logits, targets, *, alpha=0.1, beta=1.0,
                            num_classes=3, reduction="mean", row_tile=ROW_TILE):
    """Pallas forward of SymmetricCrossEntropy. logits: (N, C), targets: (N,) int."""
    if reduction not in ("mean", "sum", "none"):
        raise ValueError(f"unsupported reduction: {reduction}")
    n, c = logits.shape
    tm = min(row_tile, _round_up(n, 8))              # rows per block (multiple of 8)
    grid = (pl.cdiv(n, tm),)
    tgt_col = targets.reshape(n, 1).astype(jnp.int32)

    # Block last dims equal the full array dims -> no 128-lane padding copy needed;
    # logits keep their original dtype in HBM and are cast to f32 on load.
    in_specs = [pl.BlockSpec((tm, c), lambda i: (i, 0)),
                pl.BlockSpec((tm, 1), lambda i: (i, 0))]
    cparams = pltpu.CompilerParams(
        dimension_semantics=("parallel",),
        vmem_limit_bytes=32 * 1024 * 1024,           # safe on v5e/v6e/v7x for tm<=8192
    )

    if reduction == "none":
        kernel = functools.partial(_sym_ce_rowwise_kernel, num_classes=num_classes,
                                   alpha=float(alpha), beta=float(beta))
        out = pl.pallas_call(
            kernel,
            out_shape=jax.ShapeDtypeStruct((n, 1), jnp.float32),
            grid=grid,
            in_specs=in_specs,
            out_specs=pl.BlockSpec((tm, 1), lambda i: (i, 0)),
            compiler_params=cparams,
        )(logits, tgt_col)
        return out[:, 0]

    kernel = functools.partial(_sym_ce_partial_kernel, num_classes=num_classes,
                               alpha=float(alpha), beta=float(beta), n_valid=n)
    partials = pl.pallas_call(
        kernel,
        out_shape=jax.ShapeDtypeStruct((grid[0], 8, 128), jnp.float32),
        grid=grid,
        in_specs=in_specs,
        out_specs=pl.BlockSpec((1, 8, 128), lambda i: (i, 0, 0)),
        compiler_params=cparams,
    )(logits, tgt_col)
    total = jnp.sum(partials[:, 0, 0])               # tiny final reduce in the wrapper
    return total / n if reduction == "mean" else total


# ------------------------- pure-JAX reference (check) ------------------------ #

def _symmetric_ce_ref(logits, targets, *, alpha=0.1, beta=1.0,
                      num_classes=3, reduction="mean"):
    logits = logits.astype(jnp.float32)
    onehot = jax.nn.one_hot(targets, num_classes, dtype=jnp.float32)
    logp = jax.nn.log_softmax(logits, axis=1)
    ce = -jnp.sum(onehot * logp, axis=1)
    p = jnp.clip(jax.nn.softmax(logits, axis=1), CLAMP_MIN, 1.0)
    rce = -jnp.sum(onehot * jnp.log(p), axis=1)
    if reduction == "mean":
        ce, rce = ce.mean(), rce.mean()
    elif reduction == "sum":
        ce, rce = ce.sum(), rce.sum()
    return alpha * ce + beta * rce


if __name__ == "__main__":
    key = jax.random.PRNGKey(0)
    k1, k2 = jax.random.split(key)
    n, num_classes = 13, 3          # small, non-multiple-of-8 batch exercises row masking
    logits = jax.random.normal(k1, (n, num_classes), jnp.float32)
    targets = jax.random.randint(k2, (n,), 0, num_classes, jnp.int32)

    fwd_mean = jax.jit(functools.partial(
        symmetric_cross_entropy, alpha=0.1, beta=1.0,
        num_classes=num_classes, reduction="mean"))
    fwd_mean_tiled = jax.jit(functools.partial(      # forces a multi-block parallel grid
        symmetric_cross_entropy, alpha=0.1, beta=1.0,
        num_classes=num_classes, reduction="mean", row_tile=8))
    fwd_sum = jax.jit(functools.partial(
        symmetric_cross_entropy, alpha=0.1, beta=1.0,
        num_classes=num_classes, reduction="sum"))
    fwd_none = jax.jit(functools.partial(
        symmetric_cross_entropy, alpha=0.1, beta=1.0,
        num_classes=num_classes, reduction="none"))

    out = jax.block_until_ready(fwd_mean(logits, targets))
    ref = _symmetric_ce_ref(logits, targets, alpha=0.1, beta=1.0,
                            num_classes=num_classes, reduction="mean")
    assert out.shape == ()
    assert jnp.allclose(out, ref, atol=1e-5, rtol=1e-5), (out, ref)

    out_t = jax.block_until_ready(fwd_mean_tiled(logits, targets))
    assert jnp.allclose(out_t, ref, atol=1e-5, rtol=1e-5), (out_t, ref)

    out_s = jax.block_until_ready(fwd_sum(logits, targets))
    ref_s = _symmetric_ce_ref(logits, targets, alpha=0.1, beta=1.0,
                              num_classes=num_classes, reduction="sum")
    assert jnp.allclose(out_s, ref_s, atol=1e-5, rtol=1e-5), (out_s, ref_s)

    out_n = jax.block_until_ready(fwd_none(logits, targets))
    ref_n = _symmetric_ce_ref(logits, targets, alpha=0.1, beta=1.0,
                              num_classes=num_classes, reduction="none")
    assert out_n.shape == (n,)
    assert jnp.allclose(out_n, ref_n, atol=1e-5, rtol=1e-5), (out_n, ref_n)

    # bf16 logits stay bf16 in HBM; math is f32 in-kernel.
    logits_bf16 = logits.astype(jnp.bfloat16)
    out_b = jax.block_until_ready(fwd_mean(logits_bf16, targets))
    ref_b = _symmetric_ce_ref(logits_bf16, targets, alpha=0.1, beta=1.0,
                              num_classes=num_classes, reduction="mean")
    assert jnp.allclose(out_b, ref_b, atol=1e-5, rtol=1e-5), (out_b, ref_b)

    print("KERNEL_OK")
</pallas_src>

<mosaic_0001>
module attributes {stable_mosaic.version = 11 : i64} {
  func.func @_sym_ce_partial_kernel(%arg0: i32, %arg1: memref<16x3xf32, #tpu.memory_space<vmem>>, %arg2: memref<16x1xi32, #tpu.memory_space<vmem>>, %arg3: memref<1x8x128xf32, #tpu.memory_space<vmem>>) attributes {dimension_semantics = [#tpu.dimension_semantics<parallel>], iteration_bounds = array<i64: 1>, scalar_prefetch = 0 : i64, scratch_operands = 0 : i64, tpu.core_type = #tpu.core_type<tc>, window_params = [{transform_indices = @transform_0, window_bounds = array<i64: 16, 3>}, {transform_indices = @transform_1, window_bounds = array<i64: 16, 1>}, {transform_indices = @transform_2, window_bounds = array<i64: 1, 8, 128>}]} {
    %c0 = arith.constant 0 : index
    %c0_0 = arith.constant 0 : index
    %0 = vector.load %arg1[%c0, %c0_0] : memref<16x3xf32, #tpu.memory_space<vmem>>, vector<16x3xf32>
    %c0_1 = arith.constant 0 : index
    %c0_2 = arith.constant 0 : index
    %1 = vector.load %arg2[%c0_1, %c0_2] : memref<16x1xi32, #tpu.memory_space<vmem>>, vector<16x1xi32>
    %2 = tpu.iota {dimensions = array<i32: 1>} : vector<16x3xi32>
    %cst = arith.constant dense<0xFF800000> : vector<16xf32>
    %3 = vector.multi_reduction <maximumf>, %0, %cst [1] : vector<16x3xf32> to vector<16xf32>
    %4 = vector.shape_cast %3 : vector<16xf32> to vector<16x1xf32>
    %5 = vector.broadcast %4 : vector<16x1xf32> to vector<16x3xf32>
    %6 = arith.subf %0, %5 : vector<16x3xf32>
    %7 = math.exp %6 : vector<16x3xf32>
    %cst_3 = arith.constant dense<0.000000e+00> : vector<16xf32>
    %8 = vector.multi_reduction <add>, %7, %cst_3 [1] : vector<16x3xf32> to vector<16xf32>
    %9 = vector.shape_cast %8 : vector<16xf32> to vector<16x1xf32>
    %10 = math.log %9 : vector<16x1xf32>
    %11 = arith.addf %4, %10 : vector<16x1xf32>
    %12 = vector.broadcast %1 : vector<16x1xi32> to vector<16x3xi32>
    %13 = arith.cmpi eq, %2, %12 : vector<16x3xi32>
    %cst_4 = arith.constant 0.000000e+00 : f32
    %14 = vector.broadcast %cst_4 : f32 to vector<16x3xf32>
    %15 = arith.select %13, %0, %14 : vector<16x3xi1>, vector<16x3xf32>
    %cst_5 = arith.constant dense<0.000000e+00> : vector<16xf32>
    %16 = vector.multi_reduction <add>, %15, %cst_5 [1] : vector<16x3xf32> to vector<16xf32>
    %17 = vector.shape_cast %16 : vector<16xf32> to vector<16x1xf32>
    %18 = arith.subf %11, %17 : vector<16x1xf32>
    %cst_6 = arith.constant 16.1180954 : f32
    %19 = vector.broadcast %cst_6 : f32 to vector<16x1xf32>
    %20 = arith.minimumf %18, %19 : vector<16x1xf32>
    %cst_7 = arith.constant 1.000000e-01 : f32
    %21 = vector.broadcast %cst_7 : f32 to vector<16x1xf32>
    %22 = arith.mulf %21, %18 : vector<16x1xf32>
    %cst_8 = arith.constant 1.000000e+00 : f32
    %23 = vector.broadcast %cst_8 : f32 to vector<16x1xf32>
    %24 = arith.mulf %23, %20 : vector<16x1xf32>
    %25 = arith.addf %22, %24 : vector<16x1xf32>
    %c16_i32 = arith.constant 16 : i32
    %26 = arith.muli %arg0, %c16_i32 : i32
    %27 = tpu.iota {dimensions = array<i32: 0>} : vector<16x1xi32>
    %28 = vector.broadcast %26 : i32 to vector<16x1xi32>
    %29 = arith.addi %28, %27 : vector<16x1xi32>
    %c13_i32 = arith.constant 13 : i32
    %30 = vector.broadcast %c13_i32 : i32 to vector<16x1xi32>
    %31 = arith.cmpi slt, %29, %30 : vector<16x1xi32>
    %cst_9 = arith.constant 0.000000e+00 : f32
    %32 = vector.broadcast %cst_9 : f32 to vector<16x1xf32>
    %33 = arith.select %31, %25, %32 : vector<16x1xi1>, vector<16x1xf32>
    %34 = vector.shape_cast %33 : vector<16x1xf32> to vector<1x16x1xf32>
    %cst_10 = arith.constant dense<0.000000e+00> : vector<1xf32>
    %35 = vector.multi_reduction <add>, %34, %cst_10 [1, 2] : vector<1x16x1xf32> to vector<1xf32>
    %36 = vector.shape_cast %35 : vector<1xf32> to vector<1x1x1xf32>
    %37 = vector.extract %36[0, 0, 0] : f32 from vector<1x1x1xf32>
    %38 = vector.broadcast %37 : f32 to vector<1x8x128xf32>
    %c0_11 = arith.constant 0 : index
    %c0_12 = arith.constant 0 : index
    %c0_13 = arith.constant 0 : index
    %39 = vector.load %arg3[%c0_11, %c0_12, %c0_13] : memref<1x8x128xf32, #tpu.memory_space<vmem>>, vector<1x8x128xf32>
    tpu.vector_store %arg3[%c0_11, %c0_12, %c0_13], %38 {strides = array<i32>} : memref<1x8x128xf32, #tpu.memory_space<vmem>>, vector<1x8x128xf32>,
    return
  }
  func.func @transform_0(%arg0: i32) -> (i32, i32) {
    %c0_i32 = arith.constant 0 : i32
    %c0_i32_0 = arith.constant 0 : i32
    return %arg0, %c0_i32 : i32, i32
  }
  func.func @transform_1(%arg0: i32) -> (i32, i32) {
    %c0_i32 = arith.constant 0 : i32
    %c0_i32_0 = arith.constant 0 : i32
    return %arg0, %c0_i32 : i32, i32
  }
  func.func @transform_2(%arg0: i32) -> (i32, i32, i32) {
    %c0_i32 = arith.constant 0 : i32
    %c0_i32_0 = arith.constant 0 : i32
    %c0_i32_1 = arith.constant 0 : i32
    return %arg0, %c0_i32, %c0_i32_0 : i32, i32, i32
  }
}

</mosaic_0001>

<llo_original>
// kernel: symmetric_cross_entropy.1
$region0: #{symmetric_cross_entropy.1}
  #allocation0 [shape = 'u32[]', space=smem, size = 0x4, offset = 0x4, fixed_abs, tag = 'smem constant byte address 0x4 - core index']
  #allocation1 [shape = 'u32[72,128]{1,0:T(1,128)}', space=vmem, size = 0x9000, scoped, tag = 'internal scratch']
  %s0 = inlined_call_operand.vmem [shape: f32[13,3], index: 0, kind: input, shape index: {}]
  %s1 = inlined_call_operand.vmem [shape: s32[13,1], index: 1, kind: input, shape index: {}]
  %s2 = inlined_call_operand.vmem [shape: f32[1,8,128], index: 2, kind: output, shape index: {}]
  %s3 = sld [smem:[#allocation0]]
  $region18: #{symmetric_cross_entropy.1} parent=0
    _
  %s5 = ssub.s32 1, %s3
  %s6 = scalar_select 0, %s5, %s3
  // Predicated region
  $region2: #{symmetric_cross_entropy.1} parent=0 // pred_check
    _
  $region3: #{symmetric_cross_entropy.1} parent=0 // pred_check_branch
    %8 = sbr.rel (0) target = $region5
  $region4: #{symmetric_cross_entropy.1} parent=0 // pred_region
    _
  $region5: #{symmetric_cross_entropy.1} parent=0 // pred_fallthru
    _
  // Predicated region
  $region6: #{symmetric_cross_entropy.1} parent=0 // pred_check
    _
  $region7: #{symmetric_cross_entropy.1} parent=0 // pred_check_branch
    %10 = sbr.rel (0) target = $region9
  $region8: #{symmetric_cross_entropy.1} parent=0 // pred_region
    _
  $region9: #{symmetric_cross_entropy.1} parent=0 // pred_fallthru
    _
  %v11 = vld [vmem:[%s0] sm:$0xff]
  %v12 = vld [vmem:[%s0 + $0x8] sm:$0xff]
  %v13 = vld [vmem:[%s1] sm:$0xff]
  %v14 = vld [vmem:[%s1 + $0x8] sm:$0xff]
  %v15 = vlaneseq
  %v16 = vand.u32 %v15, 127
  %vm17 = vcmask 23552
  %v18 = vsel %vm17, %v11, -inf
  %19 = vmax.xlane.f32.xlu0 %v18
  %v20 = vpop.xlane.xlu0 %19
  %v21 = vsel %vm17, %v12, -inf
  %22 = vmax.xlane.f32.xlu0 %v21
  %v23 = vpop.xlane.xlu0 %22
  %v24 = vsub.f32 %v11, %v20
  %v25 = vsub.f32 %v12, %v23
  %v26 = vmul.f32 %v24, 1.442695
  %v27 = vpow.pop %v26
  %v28 = vmul.f32 %v25, 1.442695
  %v29 = vpow.pop %v28
  %v30 = vsel %vm17, %v27, 0.0
  %31 = vadd.xlane.f32.xlu0 %v30
  %v32 = vpop.xlane.xlu0 %31
  %v33 = vsel %vm17, %v29, 0.0
  %34 = vadd.xlane.f32.xlu0 %v33
  %v35 = vpop.xlane.xlu0 %34
  %v36 = vlog2.pop %v32
  %v37 = vmul.f32 %v36, 0.6931472
  %v38 = vlog2.pop %v35
  %v39 = vmul.f32 %v38, 0.6931472
  %v40 = vadd.f32 %v20, %v37
  %v41 = vadd.f32 %v23, %v39
  %42 = vset.pattern.permute.xlu0 0
  %43 = vperm.xlu0 %42, %v13
  %v44 = vpop.permute.xlu0 %43
  %45 = vset.pattern.permute.xlu0 0
  %46 = vperm.xlu0 %45, %v14
  %v47 = vpop.permute.xlu0 %46
  %vm48 = vcmp.eq.s32.totalorder %v16, %v44
  %vm49 = vcmp.eq.s32.totalorder %v16, %v47
  %v50 = vsel %vm48, %v11, 0.0
  %v51 = vsel %vm49, %v12, 0.0
  %v52 = vsel %vm17, %v50, 0.0
  %53 = vadd.xlane.f32.xlu0 %v52
  %v54 = vpop.xlane.xlu0 %53
  %v55 = vsel %vm17, %v51, 0.0
  %56 = vadd.xlane.f32.xlu0 %v55
  %v57 = vpop.xlane.xlu0 %56
  %v58 = vsub.f32 %v40, %v54
  %v59 = vsub.f32 %v41, %v57
  %v60 = vmin.f32 %v58, 16.118095
  %v61 = vmin.f32 %v59, 16.118095
  %v62 = vmul.f32 %v58, 0.1
  %v63 = vmul.f32 %v59, 0.1
  %v64 = vadd.f32 %v62, %v60
  %v65 = vadd.f32 %v63, %v61
  %s66 = smul.u32 0, 16
  %v67 = vlaneseq
  %v68 = vshrl.u32 %v67, 7
  %v69 = vadd.s32 %v68, 8
  %v70 = vstv %s66
  %v71 = vadd.s32 %v70, %v68
  %v72 = vadd.s32 %v70, %v69
  %vm73 = vcmp.lt.s32.totalorder %v71, 13
  %vm74 = vcmp.lt.s32.totalorder %v72, 13
  %v75 = vsel %vm73, %v64, 0.0
  %v76 = vsel %vm74, %v65, 0.0
  %vm77 = vcmask 7168
  %v78 = vsel %vm77, %v75, 0.0
  %v79 = vsel %vm77, %v76, 0.0
  %v80 = vadd.f32 %v78, %v79
  %81 = vadd.xlane.f32.xlu0 %v80
  %v82 = vpop.xlane.xlu0 %81
  %v83 = vrot.slane %v82, 4
  %v84 = vadd.f32 %v82, %v83
  %v85 = vrot.slane %v84, 2
  %v86 = vadd.f32 %v84, %v85
  %v87 = vrot.slane %v86, 1
  %v88 = vadd.f32 %v86, %v87
  %s89 = vtos %v88
  %v90 = vstv %s89
  %91 = vst [vmem:[%s2] sm:$0xff] %v90
  // Predicated region
  $region10: #{symmetric_cross_entropy.1} parent=0 // pred_check
    _
  $region11: #{symmetric_cross_entropy.1} parent=0 // pred_check_branch
    %93 = sbr.rel (0) target = $region13
  $region12: #{symmetric_cross_entropy.1} parent=0 // pred_region
    _
  $region13: #{symmetric_cross_entropy.1} parent=0 // pred_fallthru
    _
  // Predicated region
  $region14: #{symmetric_cross_entropy.1} parent=0 // pred_check
    _
  $region15: #{symmetric_cross_entropy.1} parent=0 // pred_check_branch
    %95 = sbr.rel (0) target = $region17
  $region16: #{symmetric_cross_entropy.1} parent=0 // pred_region
    _
  $region17: #{symmetric_cross_entropy.1} parent=0 // pred_fallthru
    _

</llo_original>
